<compile_context>
chip_gen: v7x
topology: tpu7x:2x2x1
jax: 0.10.0
libtpu: 0.0.40
codegen_flags: <defaults>
</compile_context>

<pallas_src>
import numpy as np
import jax
import jax.numpy as jnp
from jax import lax
from jax.experimental import pallas as pl
from jax.experimental.pallas import tpu as pltpu

KERNEL_SIZES = [1, 3, 5, 7, 9, 11]
C_PER_BRANCH = 32
C_TOTAL = C_PER_BRANCH * len(KERNEL_SIZES)   # 192
KMAX = max(KERNEL_SIZES)                     # 11
PAD = KMAX // 2                              # 5
KROWS = KMAX + 1                             # 11 taps + 1 bias row
HALO = 128                                   # right-halo block width (lanes)


def _encoder_kernel(xc_ref, xh_ref, w_ref, o_ref, win_ref):
    """xc_ref : [B, lt]          padded-signal chunk for this l-tile
       xh_ref : [B, HALO]        first 128 lanes of the next chunk (right halo)
       w_ref  : [C_TOTAL, KROWS] conv taps (cols 0..10) + bias column (col 11)
       o_ref  : [B, C_TOTAL, lt] channel-major output tile (all batches)
       win_ref: [KROWS, lt]      im2col window scratch (row 11 = ones/bias row)
    """
    B, LT = xc_ref.shape

    # Bias row of the window: written once per grid step (not per batch) so it
    # is also correct if the "parallel" grid axis is split across TensorCores.
    win_ref[pl.ds(KMAX, 1), :] = jnp.ones((1, LT), jnp.float32)

    w = w_ref[...]                                          # [192, 12], resident

    @pl.loop(0, B, unroll=bool(B <= 8))
    def _(b):
        row = xc_ref[pl.ds(b, 1), :]                        # [1, LT]
        halo = xh_ref[pl.ds(b, 1), :]                       # [1, HALO]
        xw = jnp.concatenate([row, halo], axis=1)           # [1, LT+HALO] (aligned)
        for k in range(KMAX):                               # static tap loop
            win_ref[pl.ds(k, 1), :] = xw[:, k:k + LT]       # window row k
        out = jnp.dot(w, win_ref[...],
                      preferred_element_type=jnp.float32)   # [192, LT] on the MXU
        o_ref[b] = out.astype(o_ref.dtype)


def _vmem_budget_bytes():
    """~40% of detected physical VMEM for our double-buffered blocks
    (v5e/v6e: ~51 MiB, v7x: ~25 MiB, fallback assumes a 64 MiB part)."""
    cap = 64 * 1024 * 1024
    try:
        info = pltpu.get_tpu_info()
        cap = int(getattr(info, "vmem_capacity_bytes", cap) or cap)
    except Exception:
        pass
    return (cap * 2) // 5


def _choose_l_tile(B, L, budget_bytes, max_l_tile):
    """Largest 128-multiple lane tile whose double-buffered footprint fits the
    VMEM budget; keeps >=2 l-tiles when possible and prefers exact tilings."""
    lp_units = -(-L // 128)                                   # signal, in 128-lane units
    per_unit = 4 * 128 * (2 * B * (C_TOTAL + 1) + KROWS)      # out+chunk (x2 buf) + window
    fixed = 4 * (2 * B * HALO + C_TOTAL * KROWS)              # halo buffers + weights
    units = max(1, min((budget_bytes - fixed) // per_unit,
                       max(1, max_l_tile // 128),
                       lp_units))
    if lp_units >= 2:                                         # >=2 grid steps (megacore)
        units = min(units, -(-lp_units // 2))
    # Prefer an exact tiling of the lane-padded signal (avoids a masked tail
    # block) as long as it does not shrink the tile by more than 2x.
    for u in range(units, max(units // 2, 1) - 1, -1):
        if lp_units % u == 0:
            return u * 128
    return units * 128


def signal_encoder(x, w_cl, *, max_l_tile=8192, vmem_budget_bytes=None):
    """x: [B, 1, L] float32 (PyTorch NCL). Returns [B, C_TOTAL, L] (NCL)."""
    B, Cin, L = x.shape
    assert Cin == 1
    budget = _vmem_budget_bytes() if vmem_budget_bytes is None else vmem_budget_bytes
    lt = _choose_l_tile(B, L, budget, max_l_tile)
    lp = -(-L // 128) * 128                 # lane-padded output length
    nl = -(-lp // lt)                       # number of l-tiles (grid steps)
    W = nl * lt + HALO                      # padded + extended signal width

    # Zero-pad: PAD on the left ("same" padding), out to W on the right so every
    # chunk block and every 128-lane halo block is fully in bounds (real zeros).
    x_pad = jnp.pad(x[:, 0, :], ((0, 0), (PAD, W - L - PAD)))          # [B, W]

    need = 4 * (2 * B * C_TOTAL * lt        # double-buffered output blocks
                + 2 * B * lt                # double-buffered chunk blocks
                + 2 * B * HALO              # double-buffered halo blocks
                + C_TOTAL * KROWS           # weights
                + KROWS * lt)               # im2col window scratch
    vmem_limit = int(min(need + (16 << 20), 64 << 20))

    halo_step = lt // 128                   # halo block index stride along W

    out = pl.pallas_call(
        _encoder_kernel,
        out_shape=jax.ShapeDtypeStruct((B, C_TOTAL, lp), jnp.float32),
        grid=(nl,),
        in_specs=[
            pl.BlockSpec((B, lt), lambda l: (0, l)),                        # chunk l
            pl.BlockSpec((B, HALO), lambda l: (0, (l + 1) * halo_step)),    # right halo
            pl.BlockSpec((C_TOTAL, KROWS), lambda l: (0, 0)),               # taps + bias
        ],
        out_specs=pl.BlockSpec((B, C_TOTAL, lt), lambda l: (0, 0, l)),
        scratch_shapes=[pltpu.VMEM((KROWS, lt), jnp.float32)],
        compiler_params=pltpu.CompilerParams(
            dimension_semantics=("parallel",),
            vmem_limit_bytes=vmem_limit),
        cost_estimate=pl.CostEstimate(
            flops=2 * B * nl * lt * KROWS * C_TOTAL,
            transcendentals=0,
            bytes_accessed=4 * (B * C_TOTAL * lp           # output writeback (dominant)
                                + B * nl * (lt + HALO)     # chunk + halo reads
                                + C_TOTAL * KROWS)),
    )(x_pad, x_pad, w_cl)

    return out if lp == L else out[:, :, :L]


def init_params(key):
    """Deterministic parameter init mirroring the PyTorch module shapes.
    weight[i]: [32, 1, ks] (kaiming_normal_), bias[i]: [32] (Conv1d default).
    Returns the combined [C_TOTAL, KROWS] taps+bias matrix used by the kernel,
    plus the per-branch params (for the reference check)."""
    weights, biases = [], []
    for ks in KERNEL_SIZES:
        key, kw, kb = jax.random.split(key, 3)
        std = (2.0 / ks) ** 0.5
        w = jax.random.normal(kw, (C_PER_BRANCH, 1, ks), jnp.float32) * std
        bound = 1.0 / (ks ** 0.5)
        b = jax.random.uniform(kb, (C_PER_BRANCH,), jnp.float32,
                               minval=-bound, maxval=bound)
        weights.append(w)
        biases.append(b)

    w_cl = jnp.zeros((C_TOTAL, KROWS), jnp.float32)
    for i, (ks, w) in enumerate(zip(KERNEL_SIZES, weights)):
        p = ks // 2
        # branch taps j = 0..ks-1 land at window columns PAD-p .. PAD+p
        w_cl = w_cl.at[i * C_PER_BRANCH:(i + 1) * C_PER_BRANCH,
                       PAD - p:PAD + p + 1].set(w[:, 0, :])
    w_cl = w_cl.at[:, KMAX].set(jnp.concatenate(biases, axis=0))   # bias column
    return w_cl, weights, biases


def reference_forward(x, weights, biases):
    """Pure-JAX reference identical to the PyTorch forward (NCL conv + concat)."""
    outs = []
    for ks, w, b in zip(KERNEL_SIZES, weights, biases):
        y = lax.conv_general_dilated(
            x, w, window_strides=(1,), padding=[(ks // 2, ks // 2)],
            dimension_numbers=("NCW", "OIW", "NCW"))
        outs.append(y + b[None, :, None])
    return jnp.concatenate(outs, axis=1)


if __name__ == "__main__":
    key = jax.random.PRNGKey(0)
    key, kx = jax.random.split(key)

    B, L = 2, 16
    x = jax.random.normal(kx, (B, 1, L), jnp.float32)               # PyTorch NCL

    w_cl, weights, biases = init_params(key)

    out = jax.block_until_ready(signal_encoder(x, w_cl))
    assert out.shape == (B, C_TOTAL, L)
    ref = reference_forward(x, weights, biases)
    np.testing.assert_allclose(np.asarray(out), np.asarray(ref),
                               rtol=1e-5, atol=1e-5)

    # Second shape: exercises the multi-tile grid, cross-tile halo and the
    # non-multiple-of-128 length path.
    key, kx2 = jax.random.split(key)
    L2 = 300
    x2 = jax.random.normal(kx2, (B, 1, L2), jnp.float32)
    out2 = jax.block_until_ready(signal_encoder(x2, w_cl))
    assert out2.shape == (B, C_TOTAL, L2)
    ref2 = reference_forward(x2, weights, biases)
    np.testing.assert_allclose(np.asarray(out2), np.asarray(ref2),
                               rtol=1e-5, atol=1e-5)

    print("KERNEL_OK")
</pallas_src>

<mosaic_0001>
module attributes {stable_mosaic.version = 11 : i64} {
  func.func @_encoder_kernel(%arg0: i32, %arg1: memref<2x128xf32, #tpu.memory_space<vmem>>, %arg2: memref<2x128xf32, #tpu.memory_space<vmem>>, %arg3: memref<192x12xf32, #tpu.memory_space<vmem>>, %arg4: memref<2x192x128xf32, #tpu.memory_space<vmem>>, %arg5: memref<12x128xf32, #tpu.memory_space<vmem>>) attributes {dimension_semantics = [#tpu.dimension_semantics<parallel>], iteration_bounds = array<i64: 1>, scalar_prefetch = 0 : i64, scratch_operands = 1 : i64, tpu.core_type = #tpu.core_type<tc>, window_params = [{transform_indices = @transform_0, window_bounds = array<i64: 2, 128>}, {transform_indices = @transform_1, window_bounds = array<i64: 2, 128>}, {pipeline_mode = #tpu.pipeline_mode<synchronous>, transform_indices = @transform_2, window_bounds = array<i64: 192, 12>}, {transform_indices = @transform_3, window_bounds = array<i64: 2, 192, 128>}]} {
    %cst = arith.constant 1.000000e+00 : f32
    %0 = vector.broadcast %cst : f32 to vector<1x128xf32>
    %c11 = arith.constant 11 : index
    %c0 = arith.constant 0 : index
    %1 = vector.load %arg5[%c11, %c0] : memref<12x128xf32, #tpu.memory_space<vmem>>, vector<1x128xf32>
    tpu.vector_store %arg5[%c11, %c0], %0 {strides = array<i32>} : memref<12x128xf32, #tpu.memory_space<vmem>>, vector<1x128xf32>,
    %c0_0 = arith.constant 0 : index
    %c0_1 = arith.constant 0 : index
    %2 = vector.load %arg3[%c0_0, %c0_1] : memref<192x12xf32, #tpu.memory_space<vmem>>, vector<192x12xf32>
    %c0_i32 = arith.constant 0 : i32
    %c1_i32 = arith.constant 1 : i32
    %3 = arith.muli %c0_i32, %c1_i32 : i32
    %c0_i32_2 = arith.constant 0 : i32
    %4 = arith.addi %c0_i32_2, %3 : i32
    %5 = arith.index_cast %4 : i32 to index
    %c0_3 = arith.constant 0 : index
    %6 = vector.load %arg1[%5, %c0_3] : memref<2x128xf32, #tpu.memory_space<vmem>>, vector<1x128xf32>
    %7 = arith.index_cast %4 : i32 to index
    %c0_4 = arith.constant 0 : index
    %8 = vector.load %arg2[%7, %c0_4] : memref<2x128xf32, #tpu.memory_space<vmem>>, vector<1x128xf32>
    %9 = tpu.concatenate %6, %8 in 1 : vector<1x128xf32>, vector<1x128xf32> -> vector<1x256xf32>
    %10 = vector.extract_strided_slice %9 {offsets = [0, 0], sizes = [1, 128], strides = [1, 1]} : vector<1x256xf32> to vector<1x128xf32>
    %c0_5 = arith.constant 0 : index
    %c0_6 = arith.constant 0 : index
    %11 = vector.load %arg5[%c0_5, %c0_6] : memref<12x128xf32, #tpu.memory_space<vmem>>, vector<1x128xf32>
    tpu.vector_store %arg5[%c0_5, %c0_6], %10 {strides = array<i32>} : memref<12x128xf32, #tpu.memory_space<vmem>>, vector<1x128xf32>,
    %12 = vector.extract_strided_slice %9 {offsets = [0, 1], sizes = [1, 128], strides = [1, 1]} : vector<1x256xf32> to vector<1x128xf32>
    %c1 = arith.constant 1 : index
    %c0_7 = arith.constant 0 : index
    %13 = vector.load %arg5[%c1, %c0_7] : memref<12x128xf32, #tpu.memory_space<vmem>>, vector<1x128xf32>
    tpu.vector_store %arg5[%c1, %c0_7], %12 {strides = array<i32>} : memref<12x128xf32, #tpu.memory_space<vmem>>, vector<1x128xf32>,
    %14 = vector.extract_strided_slice %9 {offsets = [0, 2], sizes = [1, 128], strides = [1, 1]} : vector<1x256xf32> to vector<1x128xf32>
    %c2 = arith.constant 2 : index
    %c0_8 = arith.constant 0 : index
    %15 = vector.load %arg5[%c2, %c0_8] : memref<12x128xf32, #tpu.memory_space<vmem>>, vector<1x128xf32>
    tpu.vector_store %arg5[%c2, %c0_8], %14 {strides = array<i32>} : memref<12x128xf32, #tpu.memory_space<vmem>>, vector<1x128xf32>,
    %16 = vector.extract_strided_slice %9 {offsets = [0, 3], sizes = [1, 128], strides = [1, 1]} : vector<1x256xf32> to vector<1x128xf32>
    %c3 = arith.constant 3 : index
    %c0_9 = arith.constant 0 : index
    %17 = vector.load %arg5[%c3, %c0_9] : memref<12x128xf32, #tpu.memory_space<vmem>>, vector<1x128xf32>
    tpu.vector_store %arg5[%c3, %c0_9], %16 {strides = array<i32>} : memref<12x128xf32, #tpu.memory_space<vmem>>, vector<1x128xf32>,
    %18 = vector.extract_strided_slice %9 {offsets = [0, 4], sizes = [1, 128], strides = [1, 1]} : vector<1x256xf32> to vector<1x128xf32>
    %c4 = arith.constant 4 : index
    %c0_10 = arith.constant 0 : index
    %19 = vector.load %arg5[%c4, %c0_10] : memref<12x128xf32, #tpu.memory_space<vmem>>, vector<1x128xf32>
    tpu.vector_store %arg5[%c4, %c0_10], %18 {strides = array<i32>} : memref<12x128xf32, #tpu.memory_space<vmem>>, vector<1x128xf32>,
    %20 = vector.extract_strided_slice %9 {offsets = [0, 5], sizes = [1, 128], strides = [1, 1]} : vector<1x256xf32> to vector<1x128xf32>
    %c5 = arith.constant 5 : index
    %c0_11 = arith.constant 0 : index
    %21 = vector.load %arg5[%c5, %c0_11] : memref<12x128xf32, #tpu.memory_space<vmem>>, vector<1x128xf32>
    tpu.vector_store %arg5[%c5, %c0_11], %20 {strides = array<i32>} : memref<12x128xf32, #tpu.memory_space<vmem>>, vector<1x128xf32>,
    %22 = vector.extract_strided_slice %9 {offsets = [0, 6], sizes = [1, 128], strides = [1, 1]} : vector<1x256xf32> to vector<1x128xf32>
    %c6 = arith.constant 6 : index
    %c0_12 = arith.constant 0 : index
    %23 = vector.load %arg5[%c6, %c0_12] : memref<12x128xf32, #tpu.memory_space<vmem>>, vector<1x128xf32>
    tpu.vector_store %arg5[%c6, %c0_12], %22 {strides = array<i32>} : memref<12x128xf32, #tpu.memory_space<vmem>>, vector<1x128xf32>,
    %24 = vector.extract_strided_slice %9 {offsets = [0, 7], sizes = [1, 128], strides = [1, 1]} : vector<1x256xf32> to vector<1x128xf32>
    %c7 = arith.constant 7 : index
    %c0_13 = arith.constant 0 : index
    %25 = vector.load %arg5[%c7, %c0_13] : memref<12x128xf32, #tpu.memory_space<vmem>>, vector<1x128xf32>
    tpu.vector_store %arg5[%c7, %c0_13], %24 {strides = array<i32>} : memref<12x128xf32, #tpu.memory_space<vmem>>, vector<1x128xf32>,
    %26 = vector.extract_strided_slice %9 {offsets = [0, 8], sizes = [1, 128], strides = [1, 1]} : vector<1x256xf32> to vector<1x128xf32>
    %c8 = arith.constant 8 : index
    %c0_14 = arith.constant 0 : index
    %27 = vector.load %arg5[%c8, %c0_14] : memref<12x128xf32, #tpu.memory_space<vmem>>, vector<1x128xf32>
    tpu.vector_store %arg5[%c8, %c0_14], %26 {strides = array<i32>} : memref<12x128xf32, #tpu.memory_space<vmem>>, vector<1x128xf32>,
    %28 = vector.extract_strided_slice %9 {offsets = [0, 9], sizes = [1, 128], strides = [1, 1]} : vector<1x256xf32> to vector<1x128xf32>
    %c9 = arith.constant 9 : index
    %c0_15 = arith.constant 0 : index
    %29 = vector.load %arg5[%c9, %c0_15] : memref<12x128xf32, #tpu.memory_space<vmem>>, vector<1x128xf32>
    tpu.vector_store %arg5[%c9, %c0_15], %28 {strides = array<i32>} : memref<12x128xf32, #tpu.memory_space<vmem>>, vector<1x128xf32>,
    %30 = vector.extract_strided_slice %9 {offsets = [0, 10], sizes = [1, 128], strides = [1, 1]} : vector<1x256xf32> to vector<1x128xf32>
    %c10 = arith.constant 10 : index
    %c0_16 = arith.constant 0 : index
    %31 = vector.load %arg5[%c10, %c0_16] : memref<12x128xf32, #tpu.memory_space<vmem>>, vector<1x128xf32>
    tpu.vector_store %arg5[%c10, %c0_16], %30 {strides = array<i32>} : memref<12x128xf32, #tpu.memory_space<vmem>>, vector<1x128xf32>,
    %c0_17 = arith.constant 0 : index
    %c0_18 = arith.constant 0 : index
    %32 = vector.load %arg5[%c0_17, %c0_18] : memref<12x128xf32, #tpu.memory_space<vmem>>, vector<12x128xf32>
    %cst_19 = arith.constant dense<0.000000e+00> : vector<192x128xf32>
    %33 = tpu.matmul %2, %32, %cst_19 {dimension_numbers = #tpu.dot_dimension_numbers<[1], [0], [0], [1], [0, 0, 1, 1], [], []>} : vector<192x12xf32>, vector<12x128xf32>, vector<192x128xf32> -> vector<192x128xf32>
    %34 = arith.index_cast %4 : i32 to index
    %c0_20 = arith.constant 0 : index
    %c0_21 = arith.constant 0 : index
    %35 = vector.load %arg4[%34, %c0_20, %c0_21] : memref<2x192x128xf32, #tpu.memory_space<vmem>>, vector<1x192x128xf32>
    %36 = vector.shape_cast %35 : vector<1x192x128xf32> to vector<192x128xf32>
    %37 = vector.shape_cast %33 : vector<192x128xf32> to vector<1x192x128xf32>
    tpu.vector_store %arg4[%34, %c0_20, %c0_21], %37 {strides = array<i32>} : memref<2x192x128xf32, #tpu.memory_space<vmem>>, vector<1x192x128xf32>,
    %c1_i32_22 = arith.constant 1 : i32
    %c1_i32_23 = arith.constant 1 : i32
    %38 = arith.muli %c1_i32_22, %c1_i32_23 : i32
    %c0_i32_24 = arith.constant 0 : i32
    %39 = arith.addi %c0_i32_24, %38 : i32
    %40 = arith.index_cast %39 : i32 to index
    %c0_25 = arith.constant 0 : index
    %41 = vector.load %arg1[%40, %c0_25] : memref<2x128xf32, #tpu.memory_space<vmem>>, vector<1x128xf32>
    %42 = arith.index_cast %39 : i32 to index
    %c0_26 = arith.constant 0 : index
    %43 = vector.load %arg2[%42, %c0_26] : memref<2x128xf32, #tpu.memory_space<vmem>>, vector<1x128xf32>
    %44 = tpu.concatenate %41, %43 in 1 : vector<1x128xf32>, vector<1x128xf32> -> vector<1x256xf32>
    %45 = vector.extract_strided_slice %44 {offsets = [0, 0], sizes = [1, 128], strides = [1, 1]} : vector<1x256xf32> to vector<1x128xf32>
    %c0_27 = arith.constant 0 : index
    %c0_28 = arith.constant 0 : index
    %46 = vector.load %arg5[%c0_27, %c0_28] : memref<12x128xf32, #tpu.memory_space<vmem>>, vector<1x128xf32>
    tpu.vector_store %arg5[%c0_27, %c0_28], %45 {strides = array<i32>} : memref<12x128xf32, #tpu.memory_space<vmem>>, vector<1x128xf32>,
    %47 = vector.extract_strided_slice %44 {offsets = [0, 1], sizes = [1, 128], strides = [1, 1]} : vector<1x256xf32> to vector<1x128xf32>
    %c1_29 = arith.constant 1 : index
    %c0_30 = arith.constant 0 : index
    %48 = vector.load %arg5[%c1_29, %c0_30] : memref<12x128xf32, #tpu.memory_space<vmem>>, vector<1x128xf32>
    tpu.vector_store %arg5[%c1_29, %c0_30], %47 {strides = array<i32>} : memref<12x128xf32, #tpu.memory_space<vmem>>, vector<1x128xf32>,
    %49 = vector.extract_strided_slice %44 {offsets = [0, 2], sizes = [1, 128], strides = [1, 1]} : vector<1x256xf32> to vector<1x128xf32>
    %c2_31 = arith.constant 2 : index
    %c0_32 = arith.constant 0 : index
    %50 = vector.load %arg5[%c2_31, %c0_32] : memref<12x128xf32, #tpu.memory_space<vmem>>, vector<1x128xf32>
    tpu.vector_store %arg5[%c2_31, %c0_32], %49 {strides = array<i32>} : memref<12x128xf32, #tpu.memory_space<vmem>>, vector<1x128xf32>,
    %51 = vector.extract_strided_slice %44 {offsets = [0, 3], sizes = [1, 128], strides = [1, 1]} : vector<1x256xf32> to vector<1x128xf32>
    %c3_33 = arith.constant 3 : index
    %c0_34 = arith.constant 0 : index
    %52 = vector.load %arg5[%c3_33, %c0_34] : memref<12x128xf32, #tpu.memory_space<vmem>>, vector<1x128xf32>
    tpu.vector_store %arg5[%c3_33, %c0_34], %51 {strides = array<i32>} : memref<12x128xf32, #tpu.memory_space<vmem>>, vector<1x128xf32>,
    %53 = vector.extract_strided_slice %44 {offsets = [0, 4], sizes = [1, 128], strides = [1, 1]} : vector<1x256xf32> to vector<1x128xf32>
    %c4_35 = arith.constant 4 : index
    %c0_36 = arith.constant 0 : index
    %54 = vector.load %arg5[%c4_35, %c0_36] : memref<12x128xf32, #tpu.memory_space<vmem>>, vector<1x128xf32>
    tpu.vector_store %arg5[%c4_35, %c0_36], %53 {strides = array<i32>} : memref<12x128xf32, #tpu.memory_space<vmem>>, vector<1x128xf32>,
    %55 = vector.extract_strided_slice %44 {offsets = [0, 5], sizes = [1, 128], strides = [1, 1]} : vector<1x256xf32> to vector<1x128xf32>
    %c5_37 = arith.constant 5 : index
    %c0_38 = arith.constant 0 : index
    %56 = vector.load %arg5[%c5_37, %c0_38] : memref<12x128xf32, #tpu.memory_space<vmem>>, vector<1x128xf32>
    tpu.vector_store %arg5[%c5_37, %c0_38], %55 {strides = array<i32>} : memref<12x128xf32, #tpu.memory_space<vmem>>, vector<1x128xf32>,
    %57 = vector.extract_strided_slice %44 {offsets = [0, 6], sizes = [1, 128], strides = [1, 1]} : vector<1x256xf32> to vector<1x128xf32>
    %c6_39 = arith.constant 6 : index
    %c0_40 = arith.constant 0 : index
    %58 = vector.load %arg5[%c6_39, %c0_40] : memref<12x128xf32, #tpu.memory_space<vmem>>, vector<1x128xf32>
    tpu.vector_store %arg5[%c6_39, %c0_40], %57 {strides = array<i32>} : memref<12x128xf32, #tpu.memory_space<vmem>>, vector<1x128xf32>,
    %59 = vector.extract_strided_slice %44 {offsets = [0, 7], sizes = [1, 128], strides = [1, 1]} : vector<1x256xf32> to vector<1x128xf32>
    %c7_41 = arith.constant 7 : index
    %c0_42 = arith.constant 0 : index
    %60 = vector.load %arg5[%c7_41, %c0_42] : memref<12x128xf32, #tpu.memory_space<vmem>>, vector<1x128xf32>
    tpu.vector_store %arg5[%c7_41, %c0_42], %59 {strides = array<i32>} : memref<12x128xf32, #tpu.memory_space<vmem>>, vector<1x128xf32>,
    %61 = vector.extract_strided_slice %44 {offsets = [0, 8], sizes = [1, 128], strides = [1, 1]} : vector<1x256xf32> to vector<1x128xf32>
    %c8_43 = arith.constant 8 : index
    %c0_44 = arith.constant 0 : index
    %62 = vector.load %arg5[%c8_43, %c0_44] : memref<12x128xf32, #tpu.memory_space<vmem>>, vector<1x128xf32>
    tpu.vector_store %arg5[%c8_43, %c0_44], %61 {strides = array<i32>} : memref<12x128xf32, #tpu.memory_space<vmem>>, vector<1x128xf32>,
    %63 = vector.extract_strided_slice %44 {offsets = [0, 9], sizes = [1, 128], strides = [1, 1]} : vector<1x256xf32> to vector<1x128xf32>
    %c9_45 = arith.constant 9 : index
    %c0_46 = arith.constant 0 : index
    %64 = vector.load %arg5[%c9_45, %c0_46] : memref<12x128xf32, #tpu.memory_space<vmem>>, vector<1x128xf32>
    tpu.vector_store %arg5[%c9_45, %c0_46], %63 {strides = array<i32>} : memref<12x128xf32, #tpu.memory_space<vmem>>, vector<1x128xf32>,
    %65 = vector.extract_strided_slice %44 {offsets = [0, 10], sizes = [1, 128], strides = [1, 1]} : vector<1x256xf32> to vector<1x128xf32>
    %c10_47 = arith.constant 10 : index
    %c0_48 = arith.constant 0 : index
    %66 = vector.load %arg5[%c10_47, %c0_48] : memref<12x128xf32, #tpu.memory_space<vmem>>, vector<1x128xf32>
    tpu.vector_store %arg5[%c10_47, %c0_48], %65 {strides = array<i32>} : memref<12x128xf32, #tpu.memory_space<vmem>>, vector<1x128xf32>,
    %c0_49 = arith.constant 0 : index
    %c0_50 = arith.constant 0 : index
    %67 = vector.load %arg5[%c0_49, %c0_50] : memref<12x128xf32, #tpu.memory_space<vmem>>, vector<12x128xf32>
    %cst_51 = arith.constant dense<0.000000e+00> : vector<192x128xf32>
    %68 = tpu.matmul %2, %67, %cst_51 {dimension_numbers = #tpu.dot_dimension_numbers<[1], [0], [0], [1], [0, 0, 1, 1], [], []>} : vector<192x12xf32>, vector<12x128xf32>, vector<192x128xf32> -> vector<192x128xf32>
    %69 = arith.index_cast %39 : i32 to index
    %c0_52 = arith.constant 0 : index
    %c0_53 = arith.constant 0 : index
    %70 = vector.load %arg4[%69, %c0_52, %c0_53] : memref<2x192x128xf32, #tpu.memory_space<vmem>>, vector<1x192x128xf32>
    %71 = vector.shape_cast %70 : vector<1x192x128xf32> to vector<192x128xf32>
    %72 = vector.shape_cast %68 : vector<192x128xf32> to vector<1x192x128xf32>
    tpu.vector_store %arg4[%69, %c0_52, %c0_53], %72 {strides = array<i32>} : memref<2x192x128xf32, #tpu.memory_space<vmem>>, vector<1x192x128xf32>,
    %c2_i32 = arith.constant 2 : i32
    return
  }
  func.func @transform_0(%arg0: i32) -> (i32, i32) {
    %c0_i32 = arith.constant 0 : i32
    %c0_i32_0 = arith.constant 0 : i32
    return %c0_i32, %arg0 : i32, i32
  }
  func.func @transform_1(%arg0: i32) -> (i32, i32) {
    %c1_i32 = arith.constant 1 : i32
    %0 = arith.addi %arg0, %c1_i32 : i32
    %c1_i32_0 = arith.constant 1 : i32
    %1 = arith.muli %0, %c1_i32_0 : i32
    %c0_i32 = arith.constant 0 : i32
    %c0_i32_1 = arith.constant 0 : i32
    return %c0_i32, %1 : i32, i32
  }
  func.func @transform_2(%arg0: i32) -> (i32, i32) {
    %c0_i32 = arith.constant 0 : i32
    %c0_i32_0 = arith.constant 0 : i32
    %c0_i32_1 = arith.constant 0 : i32
    return %c0_i32, %c0_i32_0 : i32, i32
  }
  func.func @transform_3(%arg0: i32) -> (i32, i32, i32) {
    %c0_i32 = arith.constant 0 : i32
    %c0_i32_0 = arith.constant 0 : i32
    %c0_i32_1 = arith.constant 0 : i32
    return %c0_i32, %c0_i32_0, %arg0 : i32, i32, i32
  }
}

</mosaic_0001>

<llo_original>
// kernel: tpu_custom_call.1
$region0: #{tpu_custom_call.1}
  #allocation0 [shape = 'u32[]', space=smem, size = 0x4, offset = 0x4, fixed_abs, tag = 'smem constant byte address 0x4 - core index']
  #allocation1 [shape = 'u32[144,128]{1,0:T(1,128)}', space=vmem, size = 0x12000, scoped, tag = 'internal scratch']
  #allocation2 [shape = 'f32[12,128]{1,0:T(8,128)}', space=vmem, size = 0x2000, scoped, tag = 'scratch operand']
  %s0 = inlined_call_operand.vmem [shape: f32[2,256], index: 0, kind: input, shape index: {}]
  %s1 = inlined_call_operand.vmem [shape: f32[2,256], index: 1, kind: input, shape index: {}]
  %s2 = inlined_call_operand.vmem [shape: f32[192,12], index: 2, kind: input, shape index: {}]
  %s3 = inlined_call_operand.hbm [shape: f32[2,192,128], index: 3, kind: output, shape index: {}]
  %s4 = sld [smem:[#allocation0]]
  $region22: #{tpu_custom_call.1} parent=0
    _
  %s6 = ssub.s32 1, %s4
  %s7 = scalar_select 0, %s6, %s4
  $region1: #{tpu_custom_call.1} parent=0
    #allocation3 [shape = 'u8[196608]{0}', space=vmem, size = 0x30000, scoped, tag = 'output window, operand 0, single buffered']
    #allocation4 [shape = 's32[1]{0}', space=sflag, size = 0x4, scoped, tag = 'scoped memory for tpu_custom_call.1']
    %8 = vsyncpa [#allocation4], 0
    // Predicated region
    $region2: #{tpu_custom_call.1} parent=1 // pred_check
      _
    $region3: #{tpu_custom_call.1} parent=1 // pred_check_branch
      %10 = sbr.rel (0) target = $region5
    $region4: #{tpu_custom_call.1} parent=1 // pred_region
      _
    $region5: #{tpu_custom_call.1} parent=1 // pred_fallthru
      _
    // Predicated region
    $region6: #{tpu_custom_call.1} parent=1 // pred_check
      _
    $region7: #{tpu_custom_call.1} parent=1 // pred_check_branch
      %12 = sbr.rel (0) target = $region9
    $region8: #{tpu_custom_call.1} parent=1 // pred_region
      %s13 = sadd.s32 0, 1
      %p14 = scmp.lt.s32.totalorder %s13, 1
      %s15 = scalar_select %p14, %s13, 1
      %s16 = smul.addr %s15, 2
      %s17 = scalar_lea.vmem %s1, %s16
      %s18 = sadd.s32 0, 1
    $region9: #{tpu_custom_call.1} parent=1 // pred_fallthru
      _
    // Predicated region
    $region10: #{tpu_custom_call.1} parent=1 // pred_check
      _
    $region11: #{tpu_custom_call.1} parent=1 // pred_check_branch
      %20 = sbr.rel (0) target = $region13
    $region12: #{tpu_custom_call.1} parent=1 // pred_region
      _
    $region13: #{tpu_custom_call.1} parent=1 // pred_fallthru
      _
    %s21 = sadd.s32 0, 1
    %p22 = scmp.lt.s32.totalorder %s21, 1
    %s23 = scalar_select %p22, %s21, 1
    %s24 = smul.addr %s23, 2
    %s25 = scalar_lea.vmem %s1, %s24
    %s26 = sadd.s32 0, 1
    %p27 = scmp.lt.s32.totalorder %s26, 1
    %s28 = scalar_select %p27, %s26, 1
    %s29 = smul.addr %s28, 2
    %s30 = scalar_lea.vmem %s1, %s29
    %s31 = sadd.s32 0, 1
    %32 = vst [vmem:[#allocation2 + $0xb] sm:$0x1] 1.0
    %v33 = vld [vmem:[%s2] sm:$0xff]
    %v34 = vld [vmem:[%s2 + $0x8] sm:$0xff]
    %v35 = vld [vmem:[%s2 + $0x10] sm:$0xff]
    %v36 = vld [vmem:[%s2 + $0x18] sm:$0xff]
    %v37 = vld [vmem:[%s2 + $0x20] sm:$0xff]
    %v38 = vld [vmem:[%s2 + $0x28] sm:$0xff]
    %v39 = vld [vmem:[%s2 + $0x30] sm:$0xff]
    %v40 = vld [vmem:[%s2 + $0x38] sm:$0xff]
    %v41 = vld [vmem:[%s2 + $0x40] sm:$0xff]
    %v42 = vld [vmem:[%s2 + $0x48] sm:$0xff]
    %v43 = vld [vmem:[%s2 + $0x50] sm:$0xff]
    %v44 = vld [vmem:[%s2 + $0x58] sm:$0xff]
    %v45 = vld [vmem:[%s2 + $0x60] sm:$0xff]
    %v46 = vld [vmem:[%s2 + $0x68] sm:$0xff]
    %v47 = vld [vmem:[%s2 + $0x70] sm:$0xff]
    %v48 = vld [vmem:[%s2 + $0x78] sm:$0xff]
    %v49 = vld [vmem:[%s2 + $0x80] sm:$0xff]
    %v50 = vld [vmem:[%s2 + $0x88] sm:$0xff]
    %v51 = vld [vmem:[%s2 + $0x90] sm:$0xff]
    %v52 = vld [vmem:[%s2 + $0x98] sm:$0xff]
    %v53 = vld [vmem:[%s2 + $0xa0] sm:$0xff]
    %v54 = vld [vmem:[%s2 + $0xa8] sm:$0xff]
    %v55 = vld [vmem:[%s2 + $0xb0] sm:$0xff]
    %v56 = vld [vmem:[%s2 + $0xb8] sm:$0xff]
    %v57 = vld [vmem:[%s0] sm:$0x1]
    %v58 = vld [vmem:[%s30] sm:$0x1]
    %59 = vst [vmem:[#allocation2] sm:$0x1] %v57
    %62 = vrot.lane.b32.xlu0 %v57, 127
    %v63 = vpop.permute.xlu0 %62
    %64 = vrot.lane.b32.xlu0 %v58, 127
    %v65 = vpop.permute.xlu0 %64
    %vm66 = vcmask 1039360
    %v67 = vsel %vm66, %v63, %v65
    %69 = vst [vmem:[#allocation2 + $0x1] sm:$0x1] %v67
    %70 = vrot.lane.b32.xlu0 %v57, 126
    %v71 = vpop.permute.xlu0 %70
    %72 = vrot.lane.b32.xlu0 %v58, 126
    %v73 = vpop.permute.xlu0 %72
    %vm74 = vcmask 1031168
    %v75 = vsel %vm74, %v71, %v73
    %77 = vst [vmem:[#allocation2 + $0x2] sm:$0x1] %v75
    %78 = vrot.lane.b32.xlu0 %v57, 125
    %v79 = vpop.permute.xlu0 %78
    %80 = vrot.lane.b32.xlu0 %v58, 125
    %v81 = vpop.permute.xlu0 %80
    %vm82 = vcmask 1022976
    %v83 = vsel %vm82, %v79, %v81
    %85 = vst [vmem:[#allocation2 + $0x3] sm:$0x1] %v83
    %86 = vrot.lane.b32.xlu0 %v57, 124
    %v87 = vpop.permute.xlu0 %86
    %88 = vrot.lane.b32.xlu0 %v58, 124
    %v89 = vpop.permute.xlu0 %88
    %vm90 = vcmask 1014784
    %v91 = vsel %vm90, %v87, %v89
    %93 = vst [vmem:[#allocation2 + $0x4] sm:$0x1] %v91
    %94 = vrot.lane.b32.xlu0 %v57, 123
    %v95 = vpop.permute.xlu0 %94
    %96 = vrot.lane.b32.xlu0 %v58, 123
    %v97 = vpop.permute.xlu0 %96
    %vm98 = vcmask 1006592
    %v99 = vsel %vm98, %v95, %v97
    %101 = vst [vmem:[#allocation2 + $0x5] sm:$0x1] %v99
    %102 = vrot.lane.b32.xlu0 %v57, 122
    %v103 = vpop.permute.xlu0 %102
    %104 = vrot.lane.b32.xlu0 %v58, 122
    %v105 = vpop.permute.xlu0 %104
    %vm106 = vcmask 998400
    %v107 = vsel %vm106, %v103, %v105
    %109 = vst [vmem:[#allocation2 + $0x6] sm:$0x1] %v107
    %110 = vrot.lane.b32.xlu0 %v57, 121
    %v111 = vpop.permute.xlu0 %110
    %112 = vrot.lane.b32.xlu0 %v58, 121
    %v113 = vpop.permute.xlu0 %112
    %vm114 = vcmask 990208
    %v115 = vsel %vm114, %v111, %v113
    %117 = vst [vmem:[#allocation2 + $0x7] sm:$0x1] %v115
    %118 = vrot.lane.b32.xlu0 %v57, 120
    %v119 = vpop.permute.xlu0 %118
    %120 = vrot.lane.b32.xlu0 %v58, 120
    %v121 = vpop.permute.xlu0 %120
    %vm122 = vcmask 982016
    %v123 = vsel %vm122, %v119, %v121
    %125 = vst [vmem:[#allocation2 + $0x8] sm:$0x1] %v123
    %126 = vrot.lane.b32.xlu0 %v57, 119
    %v127 = vpop.permute.xlu0 %126
    %128 = vrot.lane.b32.xlu0 %v58, 119
    %v129 = vpop.permute.xlu0 %128
    %vm130 = vcmask 973824
    %v131 = vsel %vm130, %v127, %v129
    %133 = vst [vmem:[#allocation2 + $0x9] sm:$0x1] %v131
    %134 = vrot.lane.b32.xlu0 %v57, 118
    %v135 = vpop.permute.xlu0 %134
    %136 = vrot.lane.b32.xlu0 %v58, 118
    %v137 = vpop.permute.xlu0 %136
    %vm138 = vcmask 965632
    %v139 = vsel %vm138, %v135, %v137
    %141 = vst [vmem:[#allocation2 + $0xa] sm:$0x1] %v139
    %v142 = vld [vmem:[#allocation2] sm:$0xff]
    %v143 = vld [vmem:[#allocation2 + $0x8] sm:$0xf]
    %vm144 = vcmask 97280
    %v146 = vsel %vm144, %v33, 0
    %v149 = vsel %vm144, %v34, 0
    %v152 = vsel %vm144, %v35, 0
    %v155 = vsel %vm144, %v36, 0
    %v158 = vsel %vm144, %v37, 0
    %v161 = vsel %vm144, %v38, 0
    %v164 = vsel %vm144, %v39, 0
    %v167 = vsel %vm144, %v40, 0
    %v170 = vsel %vm144, %v41, 0
    %v173 = vsel %vm144, %v42, 0
    %v176 = vsel %vm144, %v43, 0
    %v179 = vsel %vm144, %v44, 0
    %v182 = vsel %vm144, %v45, 0
    %v185 = vsel %vm144, %v46, 0
    %v188 = vsel %vm144, %v47, 0
    %v191 = vsel %vm144, %v48, 0
    %v194 = vsel %vm144, %v49, 0
    %v197 = vsel %vm144, %v50, 0
    %v200 = vsel %vm144, %v51, 0
    %v203 = vsel %vm144, %v52, 0
    %v206 = vsel %vm144, %v53, 0
    %v209 = vsel %vm144, %v54, 0
    %v212 = vsel %vm144, %v55, 0
    %v215 = vsel %vm144, %v56, 0
    %vm217 = vcmask 1043456
    %v219 = vsel %vm217, %v143, 0
    %221 = vmatprep.subr.mxu0 0.0
    %222 = vmatpush1.msra.mxu0 %v142
    %223 = vmatprep.subr.mxu0 0.0
    %224 = vmatpush1.msra.mxu0 %v219
    %225 = vmatprep.subr.mxu0 0.0
    %226 = vmatpush1.msra.mxu0 0.0
    %227 = vmatprep.subr.mxu0 0.0
    %228 = vmatpush1.msra.mxu0 0.0
    %229 = vmatprep.subr.mxu0 0.0
    %230 = vmatpush1.msra.mxu0 0.0
    %231 = vmatprep.subr.mxu0 0.0
    %232 = vmatpush1.msra.mxu0 0.0
    %233 = vmatprep.subr.mxu0 0.0
    %234 = vmatpush1.msra.mxu0 0.0
    %235 = vmatprep.subr.mxu0 0.0
    %236 = vmatpush1.msra.mxu0 0.0
    %237 = vmatprep.subr.mxu0 0.0
    %238 = vmatpush1.msra.mxu0 0.0
    %239 = vmatprep.subr.mxu0 0.0
    %240 = vmatpush1.msra.mxu0 0.0
    %241 = vmatprep.subr.mxu0 0.0
    %242 = vmatpush1.msra.mxu0 0.0
    %243 = vmatprep.subr.mxu0 0.0
    %244 = vmatpush1.msra.mxu0 0.0
    %245 = vmatprep.subr.mxu0 0.0
    %246 = vmatpush1.msra.mxu0 0.0
    %247 = vmatprep.subr.mxu0 0.0
    %248 = vmatpush1.msra.mxu0 0.0
    %249 = vmatprep.subr.mxu0 0.0
    %250 = vmatpush1.msra.mxu0 0.0
    %251 = vmatprep.subr.mxu0 0.0
    %252 = vmatpush1.msra.mxu0 0.0
    %253 = vmatprep.subr.mxu0 0.0
    %254 = vmatpush1.msra.mxu0 0.0
    %255 = vmatprep.subr.mxu0 0.0
    %256 = vmatpush1.msra.mxu0 0.0
    %257 = vmatprep.subr.mxu0 0.0
    %258 = vmatpush1.msra.mxu0 0.0
    %259 = vmatprep.subr.mxu0 0.0
    %260 = vmatpush1.msra.mxu0 0.0
    %261 = vmatprep.subr.mxu0 0.0
    %262 = vmatpush1.msra.mxu0 0.0
    %263 = vmatprep.subr.mxu0 0.0
    %264 = vmatpush1.msra.mxu0 0.0
    %265 = vmatprep.subr.mxu0 0.0
    %266 = vmatpush1.msra.mxu0 0.0
    %267 = vmatprep.subr.mxu0 0.0
    %268 = vmatpush1.msra.mxu0 0.0
    %269 = vmatprep.subr.mxu0 0.0
    %270 = vmatpush1.msra.mxu0 0.0
    %271 = vmatprep.subr.mxu0 0.0
    %272 = vmatpush1.msra.mxu0 0.0
    %273 = vmatprep.subr.mxu0 0.0
    %274 = vmatpush1.msra.mxu0 0.0
    %275 = vmatprep.subr.mxu0 0.0
    %276 = vmatpush1.msra.mxu0 0.0
    %277 = vmatprep.subr.mxu0 0.0
    %278 = vmatpush1.msra.mxu0 0.0
    %279 = vmatprep.subr.mxu0 0.0
    %280 = vmatpush1.msra.mxu0 0.0
    %281 = vmatprep.subr.mxu0 0.0
    %282 = vmatpush1.msra.mxu0 0.0
    %283 = vmatprep.subr.mxu0 0.0
    %284 = vmatpush1.msra.mxu0 0.0
    %285 = vmatprep.mubr.f32.mxu0 0.0
    %286 = vmatmul.mubr.f32.gmra.mrb[0].mxu0 %v146
    %v287 = vpop.f32.mrb[0].mxu0
    %v288 = vadd.f32 0.0, %v287
    %v289 = vpop.f32.mrb[0].mxu0
    %290 = vmatprep.mubr.f32.mxu0 0.0
    %291 = vmatmul.mubr.f32.gmra.mrb[0].mxu0 %v149
    %v292 = vpop.f32.mrb[0].mxu0
    %v293 = vadd.f32 0.0, %v292
    %v294 = vpop.f32.mrb[0].mxu0
    %295 = vmatprep.mubr.f32.mxu0 0.0
    %296 = vmatmul.mubr.f32.gmra.mrb[0].mxu0 %v152
    %v297 = vpop.f32.mrb[0].mxu0
    %v298 = vadd.f32 0.0, %v297
    %v299 = vpop.f32.mrb[0].mxu0
    %300 = vmatprep.mubr.f32.mxu0 0.0
    %301 = vmatmul.mubr.f32.gmra.mrb[0].mxu0 %v155
    %v302 = vpop.f32.mrb[0].mxu0
    %v303 = vadd.f32 0.0, %v302
    %v304 = vpop.f32.mrb[0].mxu0
    %305 = vmatprep.mubr.f32.mxu0 0.0
    %306 = vmatmul.mubr.f32.gmra.mrb[0].mxu0 %v158
    %v307 = vpop.f32.mrb[0].mxu0
    %v308 = vadd.f32 0.0, %v307
    %v309 = vpop.f32.mrb[0].mxu0
    %310 = vmatprep.mubr.f32.mxu0 0.0
    %311 = vmatmul.mubr.f32.gmra.mrb[0].mxu0 %v161
    %v312 = vpop.f32.mrb[0].mxu0
    %v313 = vadd.f32 0.0, %v312
    %v314 = vpop.f32.mrb[0].mxu0
    %315 = vmatprep.mubr.f32.mxu0 0.0
    %316 = vmatmul.mubr.f32.gmra.mrb[0].mxu0 %v164
    %v317 = vpop.f32.mrb[0].mxu0
    %v318 = vadd.f32 0.0, %v317
    %v319 = vpop.f32.mrb[0].mxu0
    %320 = vmatprep.mubr.f32.mxu0 0.0
    %321 = vmatmul.mubr.f32.gmra.mrb[0].mxu0 %v167
    %v322 = vpop.f32.mrb[0].mxu0
    %v323 = vadd.f32 0.0, %v322
    %v324 = vpop.f32.mrb[0].mxu0
    %325 = vmatprep.mubr.f32.mxu0 0.0
    %326 = vmatmul.mubr.f32.gmra.mrb[0].mxu0 %v170
    %v327 = vpop.f32.mrb[0].mxu0
    %v328 = vadd.f32 0.0, %v327
    %v329 = vpop.f32.mrb[0].mxu0
    %330 = vmatprep.mubr.f32.mxu0 0.0
    %331 = vmatmul.mubr.f32.gmra.mrb[0].mxu0 %v173
    %v332 = vpop.f32.mrb[0].mxu0
    %v333 = vadd.f32 0.0, %v332
    %v334 = vpop.f32.mrb[0].mxu0
    %335 = vmatprep.mubr.f32.mxu0 0.0
    %336 = vmatmul.mubr.f32.gmra.mrb[0].mxu0 %v176
    %v337 = vpop.f32.mrb[0].mxu0
    %v338 = vadd.f32 0.0, %v337
    %v339 = vpop.f32.mrb[0].mxu0
    %340 = vmatprep.mubr.f32.mxu0 0.0
    %341 = vmatmul.mubr.f32.gmra.mrb[0].mxu0 %v179
    %v342 = vpop.f32.mrb[0].mxu0
    %v343 = vadd.f32 0.0, %v342
    %v344 = vpop.f32.mrb[0].mxu0
    %345 = vmatprep.mubr.f32.mxu0 0.0
    %346 = vmatmul.mubr.f32.gmra.mrb[0].mxu0 %v182
    %v347 = vpop.f32.mrb[0].mxu0
    %v348 = vadd.f32 0.0, %v347
    %v349 = vpop.f32.mrb[0].mxu0
    %350 = vmatprep.mubr.f32.mxu0 0.0
    %351 = vmatmul.mubr.f32.gmra.mrb[0].mxu0 %v185
    %v352 = vpop.f32.mrb[0].mxu0
    %v353 = vadd.f32 0.0, %v352
    %v354 = vpop.f32.mrb[0].mxu0
    %355 = vmatprep.mubr.f32.mxu0 0.0
    %356 = vmatmul.mubr.f32.gmra.mrb[0].mxu0 %v188
    %v357 = vpop.f32.mrb[0].mxu0
    %v358 = vadd.f32 0.0, %v357
    %v359 = vpop.f32.mrb[0].mxu0
    %360 = vmatprep.mubr.f32.mxu0 0.0
    %361 = vmatmul.mubr.f32.gmra.mrb[0].mxu0 %v191
    %v362 = vpop.f32.mrb[0].mxu0
    %v363 = vadd.f32 0.0, %v362
    %v364 = vpop.f32.mrb[0].mxu0
    %365 = vmatprep.mubr.f32.mxu0 0.0
    %366 = vmatmul.mubr.f32.gmra.mrb[0].mxu0 %v194
    %v367 = vpop.f32.mrb[0].mxu0
    %v368 = vadd.f32 0.0, %v367
    %v369 = vpop.f32.mrb[0].mxu0
    %370 = vmatprep.mubr.f32.mxu0 0.0
    %371 = vmatmul.mubr.f32.gmra.mrb[0].mxu0 %v197
    %v372 = vpop.f32.mrb[0].mxu0
    %v373 = vadd.f32 0.0, %v372
    %v374 = vpop.f32.mrb[0].mxu0
    %375 = vmatprep.mubr.f32.mxu0 0.0
    %376 = vmatmul.mubr.f32.gmra.mrb[0].mxu0 %v200
    %v377 = vpop.f32.mrb[0].mxu0
    %v378 = vadd.f32 0.0, %v377
    %v379 = vpop.f32.mrb[0].mxu0
    %380 = vmatprep.mubr.f32.mxu0 0.0
    %381 = vmatmul.mubr.f32.gmra.mrb[0].mxu0 %v203
    %v382 = vpop.f32.mrb[0].mxu0
    %v383 = vadd.f32 0.0, %v382
    %v384 = vpop.f32.mrb[0].mxu0
    %385 = vmatprep.mubr.f32.mxu0 0.0
    %386 = vmatmul.mubr.f32.gmra.mrb[0].mxu0 %v206
    %v387 = vpop.f32.mrb[0].mxu0
    %v388 = vadd.f32 0.0, %v387
    %v389 = vpop.f32.mrb[0].mxu0
    %390 = vmatprep.mubr.f32.mxu0 0.0
    %391 = vmatmul.mubr.f32.gmra.mrb[0].mxu0 %v209
    %v392 = vpop.f32.mrb[0].mxu0
    %v393 = vadd.f32 0.0, %v392
    %v394 = vpop.f32.mrb[0].mxu0
    %395 = vmatprep.mubr.f32.mxu0 0.0
    %396 = vmatmul.mubr.f32.gmra.mrb[0].mxu0 %v212
    %v397 = vpop.f32.mrb[0].mxu0
    %v398 = vadd.f32 0.0, %v397
    %v399 = vpop.f32.mrb[0].mxu0
    %400 = vmatprep.mubr.f32.mxu0 0.0
    %401 = vmatmul.mubr.f32.gmra.mrb[0].mxu0 %v215
    %v402 = vpop.f32.mrb[0].mxu0
    %v403 = vadd.f32 0.0, %v402
    %v404 = vpop.f32.mrb[0].mxu0
    %405 = vdwg.mxu0
    %406 = vst [vmem:[#allocation3] sm:$0xff] %v288
    %407 = vst [vmem:[#allocation3 + $0x8] sm:$0xff] %v293
    %408 = vst [vmem:[#allocation3 + $0x10] sm:$0xff] %v298
    %409 = vst [vmem:[#allocation3 + $0x18] sm:$0xff] %v303
    %410 = vst [vmem:[#allocation3 + $0x20] sm:$0xff] %v308
    %411 = vst [vmem:[#allocation3 + $0x28] sm:$0xff] %v313
    %412 = vst [vmem:[#allocation3 + $0x30] sm:$0xff] %v318
    %413 = vst [vmem:[#allocation3 + $0x38] sm:$0xff] %v323
    %414 = vst [vmem:[#allocation3 + $0x40] sm:$0xff] %v328
    %415 = vst [vmem:[#allocation3 + $0x48] sm:$0xff] %v333
    %416 = vst [vmem:[#allocation3 + $0x50] sm:$0xff] %v338
    %417 = vst [vmem:[#allocation3 + $0x58] sm:$0xff] %v343
    %418 = vst [vmem:[#allocation3 + $0x60] sm:$0xff] %v348
    %419 = vst [vmem:[#allocation3 + $0x68] sm:$0xff] %v353
    %420 = vst [vmem:[#allocation3 + $0x70] sm:$0xff] %v358
    %421 = vst [vmem:[#allocation3 + $0x78] sm:$0xff] %v363
    %422 = vst [vmem:[#allocation3 + $0x80] sm:$0xff] %v368
    %423 = vst [vmem:[#allocation3 + $0x88] sm:$0xff] %v373
    %424 = vst [vmem:[#allocation3 + $0x90] sm:$0xff] %v378
    %425 = vst [vmem:[#allocation3 + $0x98] sm:$0xff] %v383
    %426 = vst [vmem:[#allocation3 + $0xa0] sm:$0xff] %v388
    %427 = vst [vmem:[#allocation3 + $0xa8] sm:$0xff] %v393
    %428 = vst [vmem:[#allocation3 + $0xb0] sm:$0xff] %v398
    %429 = vst [vmem:[#allocation3 + $0xb8] sm:$0xff] %v403
    %v430 = vld [vmem:[%s0 + $0x1] sm:$0x1]
    %v431 = vld [vmem:[%s30 + $0x1] sm:$0x1]
    %432 = vst [vmem:[#allocation2] sm:$0x1] %v430
    %435 = vrot.lane.b32.xlu0 %v430, 127
    %v436 = vpop.permute.xlu0 %435
    %437 = vrot.lane.b32.xlu0 %v431, 127
    %v438 = vpop.permute.xlu0 %437
    %v439 = vsel %vm66, %v436, %v438
    %441 = vst [vmem:[#allocation2 + $0x1] sm:$0x1] %v439
    %442 = vrot.lane.b32.xlu0 %v430, 126
    %v443 = vpop.permute.xlu0 %442
    %444 = vrot.lane.b32.xlu0 %v431, 126
    %v445 = vpop.permute.xlu0 %444
    %v446 = vsel %vm74, %v443, %v445
    %448 = vst [vmem:[#allocation2 + $0x2] sm:$0x1] %v446
    %449 = vrot.lane.b32.xlu0 %v430, 125
    %v450 = vpop.permute.xlu0 %449
    %451 = vrot.lane.b32.xlu0 %v431, 125
    %v452 = vpop.permute.xlu0 %451
    %v453 = vsel %vm82, %v450, %v452
    %455 = vst [vmem:[#allocation2 + $0x3] sm:$0x1] %v453
    %456 = vrot.lane.b32.xlu0 %v430, 124
    %v457 = vpop.permute.xlu0 %456
    %458 = vrot.lane.b32.xlu0 %v431, 124
    %v459 = vpop.permute.xlu0 %458
    %v460 = vsel %vm90, %v457, %v459
    %462 = vst [vmem:[#allocation2 + $0x4] sm:$0x1] %v460
    %463 = vrot.lane.b32.xlu0 %v430, 123
    %v464 = vpop.permute.xlu0 %463
    %465 = vrot.lane.b32.xlu0 %v431, 123
    %v466 = vpop.permute.xlu0 %465
    %v467 = vsel %vm98, %v464, %v466
    %469 = vst [vmem:[#allocation2 + $0x5] sm:$0x1] %v467
    %470 = vrot.lane.b32.xlu0 %v430, 122
    %v471 = vpop.permute.xlu0 %470
    %472 = vrot.lane.b32.xlu0 %v431, 122
    %v473 = vpop.permute.xlu0 %472
    %v474 = vsel %vm106, %v471, %v473
    %476 = vst [vmem:[#allocation2 + $0x6] sm:$0x1] %v474
    %477 = vrot.lane.b32.xlu0 %v430, 121
    %v478 = vpop.permute.xlu0 %477
    %479 = vrot.lane.b32.xlu0 %v431, 121
    %v480 = vpop.permute.xlu0 %479
    %v481 = vsel %vm114, %v478, %v480
    %483 = vst [vmem:[#allocation2 + $0x7] sm:$0x1] %v481
    %484 = vrot.lane.b32.xlu0 %v430, 120
    %v485 = vpop.permute.xlu0 %484
    %486 = vrot.lane.b32.xlu0 %v431, 120
    %v487 = vpop.permute.xlu0 %486
    %v488 = vsel %vm122, %v485, %v487
    %490 = vst [vmem:[#allocation2 + $0x8] sm:$0x1] %v488
    %491 = vrot.lane.b32.xlu0 %v430, 119
    %v492 = vpop.permute.xlu0 %491
    %493 = vrot.lane.b32.xlu0 %v431, 119
    %v494 = vpop.permute.xlu0 %493
    %v495 = vsel %vm130, %v492, %v494
    %497 = vst [vmem:[#allocation2 + $0x9] sm:$0x1] %v495
    %498 = vrot.lane.b32.xlu0 %v430, 118
    %v499 = vpop.permute.xlu0 %498
    %500 = vrot.lane.b32.xlu0 %v431, 118
    %v501 = vpop.permute.xlu0 %500
    %v502 = vsel %vm138, %v499, %v501
    %504 = vst [vmem:[#allocation2 + $0xa] sm:$0x1] %v502
    %v505 = vld [vmem:[#allocation2] sm:$0xff]
    %v506 = vld [vmem:[#allocation2 + $0x8] sm:$0xf]
    %v508 = vsel %vm217, %v506, 0
    %510 = vmatprep.subr.mxu0 0.0
    %511 = vmatpush1.msra.mxu0 %v505
    %512 = vmatprep.subr.mxu0 0.0
    %513 = vmatpush1.msra.mxu0 %v508
    %514 = vmatprep.subr.mxu0 0.0
    %515 = vmatpush1.msra.mxu0 0.0
    %516 = vmatprep.subr.mxu0 0.0
    %517 = vmatpush1.msra.mxu0 0.0
    %518 = vmatprep.subr.mxu0 0.0
    %519 = vmatpush1.msra.mxu0 0.0
    %520 = vmatprep.subr.mxu0 0.0
    %521 = vmatpush1.msra.mxu0 0.0
    %522 = vmatprep.subr.mxu0 0.0
    %523 = vmatpush1.msra.mxu0 0.0
    %524 = vmatprep.subr.mxu0 0.0
    %525 = vmatpush1.msra.mxu0 0.0
    %526 = vmatprep.subr.mxu0 0.0
    %527 = vmatpush1.msra.mxu0 0.0
    %528 = vmatprep.subr.mxu0 0.0
    %529 = vmatpush1.msra.mxu0 0.0
    %530 = vmatprep.subr.mxu0 0.0
    %531 = vmatpush1.msra.mxu0 0.0
    %532 = vmatprep.subr.mxu0 0.0
    %533 = vmatpush1.msra.mxu0 0.0
    %534 = vmatprep.subr.mxu0 0.0
    %535 = vmatpush1.msra.mxu0 0.0
    %536 = vmatprep.subr.mxu0 0.0
    %537 = vmatpush1.msra.mxu0 0.0
    %538 = vmatprep.subr.mxu0 0.0
    %539 = vmatpush1.msra.mxu0 0.0
    %540 = vmatprep.subr.mxu0 0.0
    %541 = vmatpush1.msra.mxu0 0.0
    %542 = vmatprep.subr.mxu0 0.0
    %543 = vmatpush1.msra.mxu0 0.0
    %544 = vmatprep.subr.mxu0 0.0
    %545 = vmatpush1.msra.mxu0 0.0
    %546 = vmatprep.subr.mxu0 0.0
    %547 = vmatpush1.msra.mxu0 0.0
    %548 = vmatprep.subr.mxu0 0.0
    %549 = vmatpush1.msra.mxu0 0.0
    %550 = vmatprep.subr.mxu0 0.0
    %551 = vmatpush1.msra.mxu0 0.0
    %552 = vmatprep.subr.mxu0 0.0
    %553 = vmatpush1.msra.mxu0 0.0
    %554 = vmatprep.subr.mxu0 0.0
    %555 = vmatpush1.msra.mxu0 0.0
    %556 = vmatprep.subr.mxu0 0.0
    %557 = vmatpush1.msra.mxu0 0.0
    %558 = vmatprep.subr.mxu0 0.0
    %559 = vmatpush1.msra.mxu0 0.0
    %560 = vmatprep.subr.mxu0 0.0
    %561 = vmatpush1.msra.mxu0 0.0
    %562 = vmatprep.subr.mxu0 0.0
    %563 = vmatpush1.msra.mxu0 0.0
    %564 = vmatprep.subr.mxu0 0.0
    %565 = vmatpush1.msra.mxu0 0.0
    %566 = vmatprep.subr.mxu0 0.0
    %567 = vmatpush1.msra.mxu0 0.0
    %568 = vmatprep.subr.mxu0 0.0
    %569 = vmatpush1.msra.mxu0 0.0
    %570 = vmatprep.subr.mxu0 0.0
    %571 = vmatpush1.msra.mxu0 0.0
    %572 = vmatprep.subr.mxu0 0.0
    %573 = vmatpush1.msra.mxu0 0.0
    %574 = vmatprep.mubr.f32.mxu0 0.0
    %575 = vmatmul.mubr.f32.gmra.mrb[0].mxu0 %v146
    %v576 = vpop.f32.mrb[0].mxu0
    %v577 = vadd.f32 0.0, %v576
    %v578 = vpop.f32.mrb[0].mxu0
    %579 = vmatprep.mubr.f32.mxu0 0.0
    %580 = vmatmul.mubr.f32.gmra.mrb[0].mxu0 %v149
    %v581 = vpop.f32.mrb[0].mxu0
    %v582 = vadd.f32 0.0, %v581
    %v583 = vpop.f32.mrb[0].mxu0
    %584 = vmatprep.mubr.f32.mxu0 0.0
    %585 = vmatmul.mubr.f32.gmra.mrb[0].mxu0 %v152
    %v586 = vpop.f32.mrb[0].mxu0
    %v587 = vadd.f32 0.0, %v586
    %v588 = vpop.f32.mrb[0].mxu0
    %589 = vmatprep.mubr.f32.mxu0 0.0
    %590 = vmatmul.mubr.f32.gmra.mrb[0].mxu0 %v155
    %v591 = vpop.f32.mrb[0].mxu0
    %v592 = vadd.f32 0.0, %v591
    %v593 = vpop.f32.mrb[0].mxu0
    %594 = vmatprep.mubr.f32.mxu0 0.0
    %595 = vmatmul.mubr.f32.gmra.mrb[0].mxu0 %v158
    %v596 = vpop.f32.mrb[0].mxu0
    %v597 = vadd.f32 0.0, %v596
    %v598 = vpop.f32.mrb[0].mxu0
    %599 = vmatprep.mubr.f32.mxu0 0.0
    %600 = vmatmul.mubr.f32.gmra.mrb[0].mxu0 %v161
    %v601 = vpop.f32.mrb[0].mxu0
    %v602 = vadd.f32 0.0, %v601
    %v603 = vpop.f32.mrb[0].mxu0
    %604 = vmatprep.mubr.f32.mxu0 0.0
    %605 = vmatmul.mubr.f32.gmra.mrb[0].mxu0 %v164
    %v606 = vpop.f32.mrb[0].mxu0
    %v607 = vadd.f32 0.0, %v606
    %v608 = vpop.f32.mrb[0].mxu0
    %609 = vmatprep.mubr.f32.mxu0 0.0
    %610 = vmatmul.mubr.f32.gmra.mrb[0].mxu0 %v167
    %v611 = vpop.f32.mrb[0].mxu0
    %v612 = vadd.f32 0.0, %v611
    %v613 = vpop.f32.mrb[0].mxu0
    %614 = vmatprep.mubr.f32.mxu0 0.0
    %615 = vmatmul.mubr.f32.gmra.mrb[0].mxu0 %v170
    %v616 = vpop.f32.mrb[0].mxu0
    %v617 = vadd.f32 0.0, %v616
    %v618 = vpop.f32.mrb[0].mxu0
    %619 = vmatprep.mubr.f32.mxu0 0.0
    %620 = vmatmul.mubr.f32.gmra.mrb[0].mxu0 %v173
    %v621 = vpop.f32.mrb[0].mxu0
    %v622 = vadd.f32 0.0, %v621
    %v623 = vpop.f32.mrb[0].mxu0
    %624 = vmatprep.mubr.f32.mxu0 0.0
    %625 = vmatmul.mubr.f32.gmra.mrb[0].mxu0 %v176
    %v626 = vpop.f32.mrb[0].mxu0
    %v627 = vadd.f32 0.0, %v626
    %v628 = vpop.f32.mrb[0].mxu0
    %629 = vmatprep.mubr.f32.mxu0 0.0
    %630 = vmatmul.mubr.f32.gmra.mrb[0].mxu0 %v179
    %v631 = vpop.f32.mrb[0].mxu0
    %v632 = vadd.f32 0.0, %v631
    %v633 = vpop.f32.mrb[0].mxu0
    %634 = vmatprep.mubr.f32.mxu0 0.0
    %635 = vmatmul.mubr.f32.gmra.mrb[0].mxu0 %v182
    %v636 = vpop.f32.mrb[0].mxu0
    %v637 = vadd.f32 0.0, %v636
    %v638 = vpop.f32.mrb[0].mxu0
    %639 = vmatprep.mubr.f32.mxu0 0.0
    %640 = vmatmul.mubr.f32.gmra.mrb[0].mxu0 %v185
    %v641 = vpop.f32.mrb[0].mxu0
    %v642 = vadd.f32 0.0, %v641
    %v643 = vpop.f32.mrb[0].mxu0
    %644 = vmatprep.mubr.f32.mxu0 0.0
    %645 = vmatmul.mubr.f32.gmra.mrb[0].mxu0 %v188
    %v646 = vpop.f32.mrb[0].mxu0
    %v647 = vadd.f32 0.0, %v646
    %v648 = vpop.f32.mrb[0].mxu0
    %649 = vmatprep.mubr.f32.mxu0 0.0
    %650 = vmatmul.mubr.f32.gmra.mrb[0].mxu0 %v191
    %v651 = vpop.f32.mrb[0].mxu0
    %v652 = vadd.f32 0.0, %v651
    %v653 = vpop.f32.mrb[0].mxu0
    %654 = vmatprep.mubr.f32.mxu0 0.0
    %655 = vmatmul.mubr.f32.gmra.mrb[0].mxu0 %v194
    %v656 = vpop.f32.mrb[0].mxu0
    %v657 = vadd.f32 0.0, %v656
    %v658 = vpop.f32.mrb[0].mxu0
    %659 = vmatprep.mubr.f32.mxu0 0.0
    %660 = vmatmul.mubr.f32.gmra.mrb[0].mxu0 %v197
    %v661 = vpop.f32.mrb[0].mxu0
    %v662 = vadd.f32 0.0, %v661
    %v663 = vpop.f32.mrb[0].mxu0
    %664 = vmatprep.mubr.f32.mxu0 0.0
    %665 = vmatmul.mubr.f32.gmra.mrb[0].mxu0 %v200
    %v666 = vpop.f32.mrb[0].mxu0
    %v667 = vadd.f32 0.0, %v666
    %v668 = vpop.f32.mrb[0].mxu0
    %669 = vmatprep.mubr.f32.mxu0 0.0
    %670 = vmatmul.mubr.f32.gmra.mrb[0].mxu0 %v203
    %v671 = vpop.f32.mrb[0].mxu0
    %v672 = vadd.f32 0.0, %v671
    %v673 = vpop.f32.mrb[0].mxu0
    %674 = vmatprep.mubr.f32.mxu0 0.0
    %675 = vmatmul.mubr.f32.gmra.mrb[0].mxu0 %v206
    %v676 = vpop.f32.mrb[0].mxu0
    %v677 = vadd.f32 0.0, %v676
    %v678 = vpop.f32.mrb[0].mxu0
    %679 = vmatprep.mubr.f32.mxu0 0.0
    %680 = vmatmul.mubr.f32.gmra.mrb[0].mxu0 %v209
    %v681 = vpop.f32.mrb[0].mxu0
    %v682 = vadd.f32 0.0, %v681
    %v683 = vpop.f32.mrb[0].mxu0
    %684 = vmatprep.mubr.f32.mxu0 0.0
    %685 = vmatmul.mubr.f32.gmra.mrb[0].mxu0 %v212
    %v686 = vpop.f32.mrb[0].mxu0
    %v687 = vadd.f32 0.0, %v686
    %v688 = vpop.f32.mrb[0].mxu0
    %689 = vmatprep.mubr.f32.mxu0 0.0
    %690 = vmatmul.mubr.f32.gmra.mrb[0].mxu0 %v215
    %v691 = vpop.f32.mrb[0].mxu0
    %v692 = vadd.f32 0.0, %v691
    %v693 = vpop.f32.mrb[0].mxu0
    %694 = vdwg.mxu0
    %s695 = scalar_lea.vmem [#allocation3], 192
    %696 = vst [vmem:[%s695] sm:$0xff] %v577
    %697 = vst [vmem:[%s695 + $0x8] sm:$0xff] %v582
    %698 = vst [vmem:[%s695 + $0x10] sm:$0xff] %v587
    %699 = vst [vmem:[%s695 + $0x18] sm:$0xff] %v592
    %700 = vst [vmem:[%s695 + $0x20] sm:$0xff] %v597
    %701 = vst [vmem:[%s695 + $0x28] sm:$0xff] %v602
    %702 = vst [vmem:[%s695 + $0x30] sm:$0xff] %v607
    %703 = vst [vmem:[%s695 + $0x38] sm:$0xff] %v612
    %704 = vst [vmem:[%s695 + $0x40] sm:$0xff] %v617
    %705 = vst [vmem:[%s695 + $0x48] sm:$0xff] %v622
    %706 = vst [vmem:[%s695 + $0x50] sm:$0xff] %v627
    %707 = vst [vmem:[%s695 + $0x58] sm:$0xff] %v632
    %708 = vst [vmem:[%s695 + $0x60] sm:$0xff] %v637
    %709 = vst [vmem:[%s695 + $0x68] sm:$0xff] %v642
    %710 = vst [vmem:[%s695 + $0x70] sm:$0xff] %v647
    %711 = vst [vmem:[%s695 + $0x78] sm:$0xff] %v652
    %712 = vst [vmem:[%s695 + $0x80] sm:$0xff] %v657
    %713 = vst [vmem:[%s695 + $0x88] sm:$0xff] %v662
    %714 = vst [vmem:[%s695 + $0x90] sm:$0xff] %v667
    %715 = vst [vmem:[%s695 + $0x98] sm:$0xff] %v672
    %716 = vst [vmem:[%s695 + $0xa0] sm:$0xff] %v677
    %717 = vst [vmem:[%s695 + $0xa8] sm:$0xff] %v682
    %718 = vst [vmem:[%s695 + $0xb0] sm:$0xff] %v687
    %719 = vst [vmem:[%s695 + $0xb8] sm:$0xff] %v692
    // Predicated region
    $region14: #{tpu_custom_call.1} parent=1 // pred_check
      _
    $region15: #{tpu_custom_call.1} parent=1 // pred_check_branch
      %721 = sbr.rel (0) target = $region17
    $region16: #{tpu_custom_call.1} parent=1 // pred_region
      %s723 = ssub.s32 6144, 6144
      %724 = vsyncadd [#allocation4], %s723
      %s725 = sshll.u32 [#allocation3], 4
      %s726 = int_to_ptr.vmem [resolvable:$true] %s725
      %731 = dma.vmem_to_hbm [thread:$0]  %s726, 6144, %s3, [#allocation4], 128, 128, 8
    $region17: #{tpu_custom_call.1} parent=1 // pred_fallthru
      _
    // Predicated region
    $region18: #{tpu_custom_call.1} parent=1 // pred_check
      _
    $region19: #{tpu_custom_call.1} parent=1 // pred_check_branch
      %733 = sbr.rel (0) target = $region21
    $region20: #{tpu_custom_call.1} parent=1 // pred_region
      %734 = dma.done [#allocation4], 6144
    $region21: #{tpu_custom_call.1} parent=1 // pred_fallthru
      _
    %735 = vsyncpa [#allocation4], 1

</llo_original>
